<compile_context>
chip_gen: v7x
topology: tpu7x:2x2x1
jax: 0.10.0
libtpu: 0.0.40
codegen_flags: <defaults>
</compile_context>

<pallas_src>
import functools

import numpy as np
import jax
import jax.numpy as jnp
from jax.experimental import pallas as pl
from jax.experimental.pallas import tpu as pltpu

LANE = 128
SUBLANE = 8


def _round_up(x, m):
    return ((x + m - 1) // m) * m


@functools.lru_cache(maxsize=None)
def _half_dft_numpy(n, k_pad, n_pad):
    """Half-spectrum (rfft) DFT factors in float64 (cached, built once per (N,...)).

    Returns:
      cos_f, sin_f : [n, k_pad]        forward cos/sin, zero-padded along k.
      inv          : [2*k_pad, n_pad]  fused inverse [w*cos ; w*sin], zero-padded,
                                       with conjugate-symmetry weights w folded in
                                       (w=1 for DC/Nyquist, w=2 otherwise) so the
                                       K = n//2+1 half spectrum reproduces the full
                                       circular convolution * n exactly
                                       (== torch irfft(rfft*rfft) * output_dim).
    """
    k = n // 2 + 1
    jj = np.arange(n, dtype=np.float64)
    kk = np.arange(k, dtype=np.float64)
    ang = 2.0 * np.pi * np.outer(jj, kk) / n              # [n, k]
    cos = np.cos(ang)
    sin = np.sin(ang)

    cos_f = np.zeros((n, k_pad), np.float64)
    sin_f = np.zeros((n, k_pad), np.float64)
    cos_f[:, :k] = cos
    sin_f[:, :k] = sin

    w = np.full((k,), 2.0)
    w[0] = 1.0
    if n % 2 == 0:
        w[-1] = 1.0                                        # Nyquist bin
    inv = np.zeros((2 * k_pad, n_pad), np.float64)
    inv[:k, :n] = w[:, None] * cos.T                       # rows for pr = Re(Y1*Y2)
    inv[k_pad:k_pad + k, :n] = w[:, None] * sin.T          # rows for q  = -Im(Y1*Y2)
    return cos_f, sin_f, inv


def precompute_cbp_weights(sketch1, sketch2, *, use_bf16=False):
    """Fold the (fixed) count-sketch matrices into the half-spectrum DFT in float64.

    Call ONCE per module (the sketches are non-trainable parameters), not per
    forward call: this is O(N^2) host work + a host->device transfer.
    """
    s1 = np.asarray(jax.device_get(sketch1), dtype=np.float64)
    s2 = np.asarray(jax.device_get(sketch2), dtype=np.float64)
    input_dim, n = s1.shape
    k = n // 2 + 1
    k_pad = _round_up(k, LANE)
    n_pad = _round_up(n, LANE)

    cos_f, sin_f, inv = _half_dft_numpy(n, k_pad, n_pad)
    fwd1 = np.concatenate([s1 @ cos_f, s1 @ sin_f], axis=1)   # [I, 2*k_pad]
    fwd2 = np.concatenate([s2 @ cos_f, s2 @ sin_f], axis=1)   # [I, 2*k_pad]

    wdt = jnp.bfloat16 if use_bf16 else jnp.float32
    return dict(
        fwd1=jnp.asarray(fwd1, wdt),
        fwd2=jnp.asarray(fwd2, wdt),
        inv=jnp.asarray(inv, jnp.float32),   # inverse stays f32 (heavy cancellation)
        n=n, k_pad=k_pad, n_pad=n_pad, input_dim=input_dim, use_bf16=use_bf16,
    )


def cbp_kernel(x1_ref, x2_ref, fwd1_ref, fwd2_ref, inv_ref, o_ref, sq_ref):
    k_pad = fwd1_ref.shape[1] // 2
    tb = x1_ref.shape[0]

    # --- Forward: count-sketch + half-spectrum DFT fused into ONE matmul per input.
    ab1 = jnp.dot(x1_ref[...], fwd1_ref[...], preferred_element_type=jnp.float32)  # [tb, 2*K_pad]
    ab2 = jnp.dot(x2_ref[...], fwd2_ref[...], preferred_element_type=jnp.float32)
    a1, b1 = ab1[:, :k_pad], ab1[:, k_pad:]
    a2, b2 = ab2[:, :k_pad], ab2[:, k_pad:]

    # --- Complex pointwise product on the VPU.  Y = a - i*b:
    #   pr = Re(Y1*Y2) = a1*a2 - b1*b2 ,  q = -Im(Y1*Y2) = a1*b2 + b1*a2
    pr = a1 * a2 - b1 * b2
    q = a1 * b2 + b1 * a2

    # --- Inverse transform: single matmul  [pr | q] @ [w*cos ; w*sin]  -> lane-dense
    # [tb, n_pad] tile (padded columns are zero in `inv`, so they stay zero).
    prq = jnp.concatenate([pr, q], axis=-1)                                  # [tb, 2*K_pad]
    cbp = jnp.dot(prq, inv_ref[...], preferred_element_type=jnp.float32)     # [tb, n_pad]

    # --- Signed square root: one sqrt + one select.
    r = jnp.sqrt(jnp.abs(cbp))
    ss = jnp.where(cbp < 0.0, -r, r)
    o_ref[...] = ss

    # --- Per-sublane sum-of-squares partials for the dim=0 L2 norm.  The
    # cross-sublane/cross-tile reduction happens outside the kernel, so no XLU
    # reduction per step and no cross-step accumulator (axis stays "parallel").
    sq = ss * ss
    part = sq[0:SUBLANE, :]
    for rblk in range(1, tb // SUBLANE):
        part = part + sq[rblk * SUBLANE:(rblk + 1) * SUBLANE, :]
    sq_ref[0] = part


def compact_bilinear_pooling(x1, x2, weights, *, batch_tile=128):
    """Forward pass of CompactBilinearPooling. `weights` from precompute_cbp_weights."""
    B, I = x1.shape
    assert I == weights["input_dim"]
    n, k_pad, n_pad = weights["n"], weights["k_pad"], weights["n_pad"]

    # Batch tile: multiple of 8 sublanes, capped at `batch_tile` rows per step.
    tb = min(batch_tile, max(SUBLANE, _round_up(B, SUBLANE)))
    tb = _round_up(tb, SUBLANE)
    b_pad = _round_up(B, tb)
    nb = b_pad // tb

    xdt = jnp.bfloat16 if weights["use_bf16"] else jnp.float32
    x1p = x1.astype(xdt)
    x2p = x2.astype(xdt)
    if b_pad != B:
        pad = jnp.zeros((b_pad - B, I), xdt)
        x1p = jnp.concatenate([x1p, pad], axis=0)
        x2p = jnp.concatenate([x2p, pad], axis=0)

    out_pad, sq = pl.pallas_call(
        cbp_kernel,
        out_shape=(
            jax.ShapeDtypeStruct((b_pad, n_pad), jnp.float32),       # signed-sqrt tiles
            jax.ShapeDtypeStruct((nb, SUBLANE, n_pad), jnp.float32),  # sum-of-squares partials
        ),
        grid_spec=pltpu.PrefetchScalarGridSpec(
            num_scalar_prefetch=0,
            grid=(nb,),
            in_specs=[
                pl.BlockSpec((tb, I), lambda i: (i, 0)),              # x1 batch tile
                pl.BlockSpec((tb, I), lambda i: (i, 0)),              # x2 batch tile
                pl.BlockSpec((I, 2 * k_pad), lambda i: (0, 0)),       # fused sketch·DFT (x1)
                pl.BlockSpec((I, 2 * k_pad), lambda i: (0, 0)),       # fused sketch·DFT (x2)
                pl.BlockSpec((2 * k_pad, n_pad), lambda i: (0, 0)),   # fused inverse [w*cos; w*sin]
            ],
            out_specs=[
                pl.BlockSpec((tb, n_pad), lambda i: (i, 0)),          # per-tile, pipelined writeback
                pl.BlockSpec((1, SUBLANE, n_pad), lambda i: (i, 0, 0)),
            ],
        ),
        compiler_params=pltpu.CompilerParams(
            # No cross-step state any more -> batch axis is parallel (v7x megacore).
            dimension_semantics=("parallel",),
            # Explicit scoped-VMEM budget; kept below v7x's 64 MiB physical.
            vmem_limit_bytes=48 * 1024 * 1024),
    )(x1p, x2p, weights["fwd1"], weights["fwd2"], weights["inv"])

    # Two-pass dim=0 L2 normalization (tiny XLA reduce + divide over the partials).
    denom = jnp.maximum(jnp.sqrt(jnp.sum(sq, axis=(0, 1))), 1e-12)    # [n_pad]
    return out_pad[:B, :n] / denom[None, :n]


def make_sketch(key, input_dim, output_dim):
    """Deterministic count-sketch matrix: sketch[i, h[i]] = s[i], s in {-1,+1}."""
    kh, ks = jax.random.split(key)
    h = jax.random.randint(kh, (input_dim,), 0, output_dim)
    s = (2 * jax.random.randint(ks, (input_dim,), 0, 2) - 1).astype(jnp.float32)
    return jax.nn.one_hot(h, output_dim, dtype=jnp.float32) * s[:, None]


def reference_cbp(x1, x2, sketch1, sketch2):
    """Pure-JAX reference mirroring the torch forward (via rfft/irfft)."""
    y1 = x1 @ sketch1
    y2 = x2 @ sketch2
    N = sketch1.shape[1]
    cbp = jnp.fft.irfft(jnp.fft.rfft(y1, axis=-1) * jnp.fft.rfft(y2, axis=-1),
                        n=N, axis=-1) * N
    ss = jnp.sqrt(jax.nn.relu(cbp)) - jnp.sqrt(jax.nn.relu(-cbp))
    denom = jnp.maximum(jnp.linalg.norm(ss, axis=0, keepdims=True), 1e-12)
    return ss / denom


if __name__ == "__main__":
    B, input_dims, output_dim = 8, 32, 64

    key = jax.random.PRNGKey(0)
    k_x1, k_x2, k_s1, k_s2 = jax.random.split(key, 4)

    x1 = jax.random.normal(k_x1, (B, input_dims), jnp.float32)
    x2 = jax.random.normal(k_x2, (B, input_dims), jnp.float32)
    sketch1 = make_sketch(k_s1, input_dims, output_dim)
    sketch2 = make_sketch(k_s2, input_dims, output_dim)

    # Built once per module (sketches are fixed parameters), reused across calls.
    weights = precompute_cbp_weights(sketch1, sketch2, use_bf16=False)

    out = compact_bilinear_pooling(x1, x2, weights)
    out = jax.block_until_ready(out)

    ref = jax.block_until_ready(reference_cbp(x1, x2, sketch1, sketch2))
    np.testing.assert_allclose(np.asarray(out), np.asarray(ref),
                               rtol=1e-4, atol=1e-4)

    print("KERNEL_OK")
</pallas_src>

<mosaic_0001>
module attributes {stable_mosaic.version = 11 : i64} {
  func.func @cbp_kernel(%arg0: i32, %arg1: memref<8x32xf32, #tpu.memory_space<vmem>>, %arg2: memref<8x32xf32, #tpu.memory_space<vmem>>, %arg3: memref<32x256xf32, #tpu.memory_space<vmem>>, %arg4: memref<32x256xf32, #tpu.memory_space<vmem>>, %arg5: memref<256x128xf32, #tpu.memory_space<vmem>>, %arg6: memref<8x128xf32, #tpu.memory_space<vmem>>, %arg7: memref<1x8x128xf32, #tpu.memory_space<vmem>>) attributes {dimension_semantics = [#tpu.dimension_semantics<parallel>], iteration_bounds = array<i64: 1>, scalar_prefetch = 0 : i64, scratch_operands = 0 : i64, tpu.core_type = #tpu.core_type<tc>, window_params = [{transform_indices = @transform_0, window_bounds = array<i64: 8, 32>}, {transform_indices = @transform_1, window_bounds = array<i64: 8, 32>}, {pipeline_mode = #tpu.pipeline_mode<synchronous>, transform_indices = @transform_2, window_bounds = array<i64: 32, 256>}, {pipeline_mode = #tpu.pipeline_mode<synchronous>, transform_indices = @transform_3, window_bounds = array<i64: 32, 256>}, {pipeline_mode = #tpu.pipeline_mode<synchronous>, transform_indices = @transform_4, window_bounds = array<i64: 256, 128>}, {transform_indices = @transform_5, window_bounds = array<i64: 8, 128>}, {transform_indices = @transform_6, window_bounds = array<i64: 1, 8, 128>}]} {
    %c0 = arith.constant 0 : index
    %c0_0 = arith.constant 0 : index
    %0 = vector.load %arg1[%c0, %c0_0] : memref<8x32xf32, #tpu.memory_space<vmem>>, vector<8x32xf32>
    %c0_1 = arith.constant 0 : index
    %c0_2 = arith.constant 0 : index
    %1 = vector.load %arg3[%c0_1, %c0_2] : memref<32x256xf32, #tpu.memory_space<vmem>>, vector<32x256xf32>
    %cst = arith.constant dense<0.000000e+00> : vector<8x256xf32>
    %2 = tpu.matmul %0, %1, %cst {dimension_numbers = #tpu.dot_dimension_numbers<[1], [0], [0], [1], [0, 0, 1, 1], [], []>} : vector<8x32xf32>, vector<32x256xf32>, vector<8x256xf32> -> vector<8x256xf32>
    %c0_3 = arith.constant 0 : index
    %c0_4 = arith.constant 0 : index
    %3 = vector.load %arg2[%c0_3, %c0_4] : memref<8x32xf32, #tpu.memory_space<vmem>>, vector<8x32xf32>
    %c0_5 = arith.constant 0 : index
    %c0_6 = arith.constant 0 : index
    %4 = vector.load %arg4[%c0_5, %c0_6] : memref<32x256xf32, #tpu.memory_space<vmem>>, vector<32x256xf32>
    %cst_7 = arith.constant dense<0.000000e+00> : vector<8x256xf32>
    %5 = tpu.matmul %3, %4, %cst_7 {dimension_numbers = #tpu.dot_dimension_numbers<[1], [0], [0], [1], [0, 0, 1, 1], [], []>} : vector<8x32xf32>, vector<32x256xf32>, vector<8x256xf32> -> vector<8x256xf32>
    %6 = vector.extract_strided_slice %2 {offsets = [0, 0], sizes = [8, 128], strides = [1, 1]} : vector<8x256xf32> to vector<8x128xf32>
    %7 = vector.extract_strided_slice %2 {offsets = [0, 128], sizes = [8, 128], strides = [1, 1]} : vector<8x256xf32> to vector<8x128xf32>
    %8 = vector.extract_strided_slice %5 {offsets = [0, 0], sizes = [8, 128], strides = [1, 1]} : vector<8x256xf32> to vector<8x128xf32>
    %9 = vector.extract_strided_slice %5 {offsets = [0, 128], sizes = [8, 128], strides = [1, 1]} : vector<8x256xf32> to vector<8x128xf32>
    %10 = arith.mulf %6, %8 : vector<8x128xf32>
    %11 = arith.mulf %7, %9 : vector<8x128xf32>
    %12 = arith.subf %10, %11 : vector<8x128xf32>
    %13 = arith.mulf %6, %9 : vector<8x128xf32>
    %14 = arith.mulf %7, %8 : vector<8x128xf32>
    %15 = arith.addf %13, %14 : vector<8x128xf32>
    %16 = tpu.concatenate %12, %15 in 1 : vector<8x128xf32>, vector<8x128xf32> -> vector<8x256xf32>
    %c0_8 = arith.constant 0 : index
    %c0_9 = arith.constant 0 : index
    %17 = vector.load %arg5[%c0_8, %c0_9] : memref<256x128xf32, #tpu.memory_space<vmem>>, vector<256x128xf32>
    %cst_10 = arith.constant dense<0.000000e+00> : vector<8x128xf32>
    %18 = tpu.matmul %16, %17, %cst_10 {dimension_numbers = #tpu.dot_dimension_numbers<[1], [0], [0], [1], [0, 0, 1, 1], [], []>} : vector<8x256xf32>, vector<256x128xf32>, vector<8x128xf32> -> vector<8x128xf32>
    %19 = math.absf %18 : vector<8x128xf32>
    %20 = math.sqrt %19 : vector<8x128xf32>
    %cst_11 = arith.constant 0.000000e+00 : f32
    %21 = vector.broadcast %cst_11 : f32 to vector<8x128xf32>
    %22 = arith.cmpf olt, %18, %21 : vector<8x128xf32>
    %cst_12 = arith.constant 0.000000e+00 : f32
    %23 = vector.broadcast %cst_12 : f32 to vector<8x128xf32>
    %24 = arith.subf %23, %20 : vector<8x128xf32>
    %25 = arith.select %22, %24, %20 : vector<8x128xi1>, vector<8x128xf32>
    %c0_13 = arith.constant 0 : index
    %c0_14 = arith.constant 0 : index
    %26 = vector.load %arg6[%c0_13, %c0_14] : memref<8x128xf32, #tpu.memory_space<vmem>>, vector<8x128xf32>
    tpu.vector_store %arg6[%c0_13, %c0_14], %25 {strides = array<i32>} : memref<8x128xf32, #tpu.memory_space<vmem>>, vector<8x128xf32>,
    %27 = arith.mulf %25, %25 : vector<8x128xf32>
    %c0_15 = arith.constant 0 : index
    %c0_16 = arith.constant 0 : index
    %c0_17 = arith.constant 0 : index
    %28 = vector.load %arg7[%c0_15, %c0_16, %c0_17] : memref<1x8x128xf32, #tpu.memory_space<vmem>>, vector<1x8x128xf32>
    %29 = vector.shape_cast %28 : vector<1x8x128xf32> to vector<8x128xf32>
    %30 = vector.shape_cast %27 : vector<8x128xf32> to vector<1x8x128xf32>
    tpu.vector_store %arg7[%c0_15, %c0_16, %c0_17], %30 {strides = array<i32>} : memref<1x8x128xf32, #tpu.memory_space<vmem>>, vector<1x8x128xf32>,
    return
  }
  func.func @transform_0(%arg0: i32) -> (i32, i32) {
    %c0_i32 = arith.constant 0 : i32
    %c0_i32_0 = arith.constant 0 : i32
    return %arg0, %c0_i32 : i32, i32
  }
  func.func @transform_1(%arg0: i32) -> (i32, i32) {
    %c0_i32 = arith.constant 0 : i32
    %c0_i32_0 = arith.constant 0 : i32
    return %arg0, %c0_i32 : i32, i32
  }
  func.func @transform_2(%arg0: i32) -> (i32, i32) {
    %c0_i32 = arith.constant 0 : i32
    %c0_i32_0 = arith.constant 0 : i32
    %c0_i32_1 = arith.constant 0 : i32
    return %c0_i32, %c0_i32_0 : i32, i32
  }
  func.func @transform_3(%arg0: i32) -> (i32, i32) {
    %c0_i32 = arith.constant 0 : i32
    %c0_i32_0 = arith.constant 0 : i32
    %c0_i32_1 = arith.constant 0 : i32
    return %c0_i32, %c0_i32_0 : i32, i32
  }
  func.func @transform_4(%arg0: i32) -> (i32, i32) {
    %c0_i32 = arith.constant 0 : i32
    %c0_i32_0 = arith.constant 0 : i32
    %c0_i32_1 = arith.constant 0 : i32
    return %c0_i32, %c0_i32_0 : i32, i32
  }
  func.func @transform_5(%arg0: i32) -> (i32, i32) {
    %c0_i32 = arith.constant 0 : i32
    %c0_i32_0 = arith.constant 0 : i32
    return %arg0, %c0_i32 : i32, i32
  }
  func.func @transform_6(%arg0: i32) -> (i32, i32, i32) {
    %c0_i32 = arith.constant 0 : i32
    %c0_i32_0 = arith.constant 0 : i32
    %c0_i32_1 = arith.constant 0 : i32
    return %arg0, %c0_i32, %c0_i32_0 : i32, i32, i32
  }
}

</mosaic_0001>

<llo_original>
// kernel: tpu_custom_call.1
$region0: #{tpu_custom_call.1}
  #allocation0 [shape = 'u32[]', space=smem, size = 0x4, offset = 0x4, fixed_abs, tag = 'smem constant byte address 0x4 - core index']
  #allocation1 [shape = 'u32[144,128]{1,0:T(1,128)}', space=vmem, size = 0x12000, scoped, tag = 'internal scratch']
  %s0 = inlined_call_operand.hbm [shape: f32[8,32], index: 0, kind: input, shape index: {}]
  %s1 = inlined_call_operand.hbm [shape: f32[8,32], index: 1, kind: input, shape index: {}]
  %s2 = inlined_call_operand.hbm [shape: f32[32,256], index: 2, kind: input, shape index: {}]
  %s3 = inlined_call_operand.hbm [shape: f32[32,256], index: 3, kind: input, shape index: {}]
  %s4 = inlined_call_operand.hbm [shape: f32[256,128], index: 4, kind: input, shape index: {}]
  %s5 = inlined_call_operand.hbm [shape: f32[8,128], index: 5, kind: output, shape index: {0}]
  %s6 = inlined_call_operand.hbm [shape: f32[1,8,128], index: 6, kind: output, shape index: {1}]
  %7 = xla_tuple %s5, %s6
  %s8 = sld [smem:[#allocation0]]
  $region58: #{tpu_custom_call.1} parent=0
    _
  %s10 = ssub.s32 1, %s8
  %s11 = scalar_select 0, %s10, %s8
  $region1: #{tpu_custom_call.1} parent=0
    #allocation2 [shape = 'u8[4096]{0}', space=vmem, size = 0x1000, scoped, tag = 'input window, operand 0, single buffered']
    #allocation3 [shape = 's32[1]{0}', space=sflag, size = 0x4, scoped, tag = 'scoped memory for tpu_custom_call.1']
    #allocation4 [shape = 's32[1]{0}', space=sflag, size = 0x4, scoped, tag = 'scoped memory for tpu_custom_call.1']
    #allocation5 [shape = 'u8[4096]{0}', space=vmem, size = 0x1000, scoped, tag = 'input window, operand 1, single buffered']
    #allocation6 [shape = 's32[1]{0}', space=sflag, size = 0x4, scoped, tag = 'scoped memory for tpu_custom_call.1']
    #allocation7 [shape = 'u8[32768]{0}', space=vmem, size = 0x8000, scoped, tag = 'input window, operand 2, single buffered']
    #allocation8 [shape = 'u8[32768]{0}', space=vmem, size = 0x8000, scoped, tag = 'input window, operand 3, single buffered']
    #allocation9 [shape = 's32[1]{0}', space=sflag, size = 0x4, scoped, tag = 'scoped memory for tpu_custom_call.1']
    #allocation10 [shape = 'u8[131072]{0}', space=vmem, size = 0x20000, scoped, tag = 'input window, operand 4, single buffered']
    #allocation11 [shape = 'u8[4096]{0}', space=vmem, size = 0x1000, scoped, tag = 'output window, operand 0, single buffered']
    #allocation12 [shape = 'u8[4096]{0}', space=vmem, size = 0x1000, scoped, tag = 'output window, operand 1, single buffered']
    #allocation13 [shape = 's32[1]{0}', space=sflag, size = 0x4, scoped, tag = 'scoped memory for tpu_custom_call.1']
    %12 = vsyncpa [#allocation3], 0
    %13 = vsyncpa [#allocation6], 0
    %14 = vsyncpa [#allocation9], 0
    %15 = vsyncpa [#allocation4], 0
    %16 = vsyncpa [#allocation13], 0
    // Predicated region
    $region2: #{tpu_custom_call.1} parent=1 // pred_check
      _
    $region3: #{tpu_custom_call.1} parent=1 // pred_check_branch
      %18 = sbr.rel (0) target = $region5
    $region4: #{tpu_custom_call.1} parent=1 // pred_region
      %s20 = ssub.s32 128, 128
      %21 = vsyncadd [#allocation3], %s20
      %s23 = sshll.u32 [#allocation2], 4
      %s24 = int_to_ptr.vmem [resolvable:$true] %s23
      %26 = dma.hbm_to_vmem [thread:$0]  %s0, 128, %s24, [#allocation3]
    $region5: #{tpu_custom_call.1} parent=1 // pred_fallthru
      _
    // Predicated region
    $region6: #{tpu_custom_call.1} parent=1 // pred_check
      _
    $region7: #{tpu_custom_call.1} parent=1 // pred_check_branch
      %28 = sbr.rel (0) target = $region9
    $region8: #{tpu_custom_call.1} parent=1 // pred_region
      %s30 = ssub.s32 128, 128
      %31 = vsyncadd [#allocation6], %s30
      %s33 = sshll.u32 [#allocation5], 4
      %s34 = int_to_ptr.vmem [resolvable:$true] %s33
      %36 = dma.hbm_to_vmem [thread:$0]  %s1, 128, %s34, [#allocation6]
    $region9: #{tpu_custom_call.1} parent=1 // pred_fallthru
      _
    // Predicated region
    $region10: #{tpu_custom_call.1} parent=1 // pred_check
      _
    $region11: #{tpu_custom_call.1} parent=1 // pred_check_branch
      %38 = sbr.rel (0) target = $region13
    $region12: #{tpu_custom_call.1} parent=1 // pred_region
      %s40 = ssub.s32 1024, 1024
      %41 = vsyncadd [#allocation6], %s40
      %s42 = sshll.u32 [#allocation7], 4
      %s43 = int_to_ptr.vmem [resolvable:$true] %s42
      %48 = dma.hbm_to_vmem [thread:$0]  %s2, 1024, %s43, [#allocation6], 256, 256, 16
    $region13: #{tpu_custom_call.1} parent=1 // pred_fallthru
      _
    // Predicated region
    $region14: #{tpu_custom_call.1} parent=1 // pred_check
      _
    $region15: #{tpu_custom_call.1} parent=1 // pred_check_branch
      %50 = sbr.rel (0) target = $region17
    $region16: #{tpu_custom_call.1} parent=1 // pred_region
      %s52 = ssub.s32 1024, 1024
      %53 = vsyncadd [#allocation9], %s52
      %s54 = sshll.u32 [#allocation8], 4
      %s55 = int_to_ptr.vmem [resolvable:$true] %s54
      %60 = dma.hbm_to_vmem [thread:$0]  %s3, 1024, %s55, [#allocation9], 256, 256, 16
    $region17: #{tpu_custom_call.1} parent=1 // pred_fallthru
      _
    // Predicated region
    $region18: #{tpu_custom_call.1} parent=1 // pred_check
      _
    $region19: #{tpu_custom_call.1} parent=1 // pred_check_branch
      %62 = sbr.rel (0) target = $region21
    $region20: #{tpu_custom_call.1} parent=1 // pred_region
      %s64 = ssub.s32 4096, 4096
      %65 = vsyncadd [#allocation9], %s64
      %s66 = sshll.u32 [#allocation10], 4
      %s67 = int_to_ptr.vmem [resolvable:$true] %s66
      %72 = dma.hbm_to_vmem [thread:$0]  %s4, 4096, %s67, [#allocation9], 128, 128, 8
    $region21: #{tpu_custom_call.1} parent=1 // pred_fallthru
      _
    // Predicated region
    $region22: #{tpu_custom_call.1} parent=1 // pred_check
      _
    $region23: #{tpu_custom_call.1} parent=1 // pred_check_branch
      %74 = sbr.rel (0) target = $region25
    $region24: #{tpu_custom_call.1} parent=1 // pred_region
      %75 = dma.done [#allocation3], 128
    $region25: #{tpu_custom_call.1} parent=1 // pred_fallthru
      _
    // Predicated region
    $region26: #{tpu_custom_call.1} parent=1 // pred_check
      _
    $region27: #{tpu_custom_call.1} parent=1 // pred_check_branch
      %77 = sbr.rel (0) target = $region29
    $region28: #{tpu_custom_call.1} parent=1 // pred_region
      %78 = dma.done [#allocation6], 128
    $region29: #{tpu_custom_call.1} parent=1 // pred_fallthru
      _
    // Predicated region
    $region30: #{tpu_custom_call.1} parent=1 // pred_check
      _
    $region31: #{tpu_custom_call.1} parent=1 // pred_check_branch
      %80 = sbr.rel (0) target = $region33
    $region32: #{tpu_custom_call.1} parent=1 // pred_region
      %81 = dma.done [#allocation6], 1024
    $region33: #{tpu_custom_call.1} parent=1 // pred_fallthru
      _
    // Predicated region
    $region34: #{tpu_custom_call.1} parent=1 // pred_check
      _
    $region35: #{tpu_custom_call.1} parent=1 // pred_check_branch
      %83 = sbr.rel (0) target = $region37
    $region36: #{tpu_custom_call.1} parent=1 // pred_region
      %84 = dma.done [#allocation9], 1024
    $region37: #{tpu_custom_call.1} parent=1 // pred_fallthru
      _
    // Predicated region
    $region38: #{tpu_custom_call.1} parent=1 // pred_check
      _
    $region39: #{tpu_custom_call.1} parent=1 // pred_check_branch
      %86 = sbr.rel (0) target = $region41
    $region40: #{tpu_custom_call.1} parent=1 // pred_region
      %87 = dma.done [#allocation9], 4096
    $region41: #{tpu_custom_call.1} parent=1 // pred_fallthru
      _
    %v88 = vld [vmem:[#allocation2] sm:$0xff]
    %v89 = vld [vmem:[#allocation7] sm:$0xff]
    %v90 = vld [vmem:[#allocation7 + $0x8] sm:$0xff]
    %v91 = vld [vmem:[#allocation7 + $0x10] sm:$0xff]
    %v92 = vld [vmem:[#allocation7 + $0x18] sm:$0xff]
    %v93 = vld [vmem:[#allocation7 + $0x20] sm:$0xff]
    %v94 = vld [vmem:[#allocation7 + $0x28] sm:$0xff]
    %v95 = vld [vmem:[#allocation7 + $0x30] sm:$0xff]
    %v96 = vld [vmem:[#allocation7 + $0x38] sm:$0xff]
    %vm97 = vcmask 261120
    %v99 = vsel %vm97, %v88, 0
    %101 = vmatprep.subr.mxu0 %v90
    %102 = vmatpush1.msra.mxu0 %v89
    %103 = vmatprep.subr.mxu0 %v92
    %104 = vmatpush1.msra.mxu0 %v91
    %105 = vmatprep.subr.mxu0 %v94
    %106 = vmatpush1.msra.mxu0 %v93
    %107 = vmatprep.subr.mxu0 %v96
    %108 = vmatpush1.msra.mxu0 %v95
    %109 = vmatprep.subr.mxu0 0.0
    %110 = vmatpush1.msra.mxu0 0.0
    %111 = vmatprep.subr.mxu0 0.0
    %112 = vmatpush1.msra.mxu0 0.0
    %113 = vmatprep.subr.mxu0 0.0
    %114 = vmatpush1.msra.mxu0 0.0
    %115 = vmatprep.subr.mxu0 0.0
    %116 = vmatpush1.msra.mxu0 0.0
    %117 = vmatprep.subr.mxu0 0.0
    %118 = vmatpush1.msra.mxu0 0.0
    %119 = vmatprep.subr.mxu0 0.0
    %120 = vmatpush1.msra.mxu0 0.0
    %121 = vmatprep.subr.mxu0 0.0
    %122 = vmatpush1.msra.mxu0 0.0
    %123 = vmatprep.subr.mxu0 0.0
    %124 = vmatpush1.msra.mxu0 0.0
    %125 = vmatprep.subr.mxu0 0.0
    %126 = vmatpush1.msra.mxu0 0.0
    %127 = vmatprep.subr.mxu0 0.0
    %128 = vmatpush1.msra.mxu0 0.0
    %129 = vmatprep.subr.mxu0 0.0
    %130 = vmatpush1.msra.mxu0 0.0
    %131 = vmatprep.subr.mxu0 0.0
    %132 = vmatpush1.msra.mxu0 0.0
    %133 = vmatprep.subr.mxu0 0.0
    %134 = vmatpush1.msra.mxu0 0.0
    %135 = vmatprep.subr.mxu0 0.0
    %136 = vmatpush1.msra.mxu0 0.0
    %137 = vmatprep.subr.mxu0 0.0
    %138 = vmatpush1.msra.mxu0 0.0
    %139 = vmatprep.subr.mxu0 0.0
    %140 = vmatpush1.msra.mxu0 0.0
    %141 = vmatprep.subr.mxu0 0.0
    %142 = vmatpush1.msra.mxu0 0.0
    %143 = vmatprep.subr.mxu0 0.0
    %144 = vmatpush1.msra.mxu0 0.0
    %145 = vmatprep.subr.mxu0 0.0
    %146 = vmatpush1.msra.mxu0 0.0
    %147 = vmatprep.subr.mxu0 0.0
    %148 = vmatpush1.msra.mxu0 0.0
    %149 = vmatprep.subr.mxu0 0.0
    %150 = vmatpush1.msra.mxu0 0.0
    %151 = vmatprep.subr.mxu0 0.0
    %152 = vmatpush1.msra.mxu0 0.0
    %153 = vmatprep.subr.mxu0 0.0
    %154 = vmatpush1.msra.mxu0 0.0
    %155 = vmatprep.subr.mxu0 0.0
    %156 = vmatpush1.msra.mxu0 0.0
    %157 = vmatprep.subr.mxu0 0.0
    %158 = vmatpush1.msra.mxu0 0.0
    %159 = vmatprep.subr.mxu0 0.0
    %160 = vmatpush1.msra.mxu0 0.0
    %161 = vmatprep.subr.mxu0 0.0
    %162 = vmatpush1.msra.mxu0 0.0
    %163 = vmatprep.subr.mxu0 0.0
    %164 = vmatpush1.msra.mxu0 0.0
    %165 = vmatprep.mubr.f32.mxu0 0.0
    %166 = vmatmul.mubr.f32.gmra.mrb[0].mxu0 %v99
    %v167 = vpop.f32.mrb[0].mxu0
    %v168 = vadd.f32 0.0, %v167
    %v169 = vpop.f32.mrb[0].mxu0
    %v170 = vadd.f32 0.0, %v169
    %171 = vdwg.mxu0
    %v172 = vld [vmem:[#allocation5] sm:$0xff]
    %v173 = vld [vmem:[#allocation8] sm:$0xff]
    %v174 = vld [vmem:[#allocation8 + $0x8] sm:$0xff]
    %v175 = vld [vmem:[#allocation8 + $0x10] sm:$0xff]
    %v176 = vld [vmem:[#allocation8 + $0x18] sm:$0xff]
    %v177 = vld [vmem:[#allocation8 + $0x20] sm:$0xff]
    %v178 = vld [vmem:[#allocation8 + $0x28] sm:$0xff]
    %v179 = vld [vmem:[#allocation8 + $0x30] sm:$0xff]
    %v180 = vld [vmem:[#allocation8 + $0x38] sm:$0xff]
    %v182 = vsel %vm97, %v172, 0
    %184 = vmatprep.subr.mxu0 %v174
    %185 = vmatpush1.msra.mxu0 %v173
    %186 = vmatprep.subr.mxu0 %v176
    %187 = vmatpush1.msra.mxu0 %v175
    %188 = vmatprep.subr.mxu0 %v178
    %189 = vmatpush1.msra.mxu0 %v177
    %190 = vmatprep.subr.mxu0 %v180
    %191 = vmatpush1.msra.mxu0 %v179
    %192 = vmatprep.subr.mxu0 0.0
    %193 = vmatpush1.msra.mxu0 0.0
    %194 = vmatprep.subr.mxu0 0.0
    %195 = vmatpush1.msra.mxu0 0.0
    %196 = vmatprep.subr.mxu0 0.0
    %197 = vmatpush1.msra.mxu0 0.0
    %198 = vmatprep.subr.mxu0 0.0
    %199 = vmatpush1.msra.mxu0 0.0
    %200 = vmatprep.subr.mxu0 0.0
    %201 = vmatpush1.msra.mxu0 0.0
    %202 = vmatprep.subr.mxu0 0.0
    %203 = vmatpush1.msra.mxu0 0.0
    %204 = vmatprep.subr.mxu0 0.0
    %205 = vmatpush1.msra.mxu0 0.0
    %206 = vmatprep.subr.mxu0 0.0
    %207 = vmatpush1.msra.mxu0 0.0
    %208 = vmatprep.subr.mxu0 0.0
    %209 = vmatpush1.msra.mxu0 0.0
    %210 = vmatprep.subr.mxu0 0.0
    %211 = vmatpush1.msra.mxu0 0.0
    %212 = vmatprep.subr.mxu0 0.0
    %213 = vmatpush1.msra.mxu0 0.0
    %214 = vmatprep.subr.mxu0 0.0
    %215 = vmatpush1.msra.mxu0 0.0
    %216 = vmatprep.subr.mxu0 0.0
    %217 = vmatpush1.msra.mxu0 0.0
    %218 = vmatprep.subr.mxu0 0.0
    %219 = vmatpush1.msra.mxu0 0.0
    %220 = vmatprep.subr.mxu0 0.0
    %221 = vmatpush1.msra.mxu0 0.0
    %222 = vmatprep.subr.mxu0 0.0
    %223 = vmatpush1.msra.mxu0 0.0
    %224 = vmatprep.subr.mxu0 0.0
    %225 = vmatpush1.msra.mxu0 0.0
    %226 = vmatprep.subr.mxu0 0.0
    %227 = vmatpush1.msra.mxu0 0.0
    %228 = vmatprep.subr.mxu0 0.0
    %229 = vmatpush1.msra.mxu0 0.0
    %230 = vmatprep.subr.mxu0 0.0
    %231 = vmatpush1.msra.mxu0 0.0
    %232 = vmatprep.subr.mxu0 0.0
    %233 = vmatpush1.msra.mxu0 0.0
    %234 = vmatprep.subr.mxu0 0.0
    %235 = vmatpush1.msra.mxu0 0.0
    %236 = vmatprep.subr.mxu0 0.0
    %237 = vmatpush1.msra.mxu0 0.0
    %238 = vmatprep.subr.mxu0 0.0
    %239 = vmatpush1.msra.mxu0 0.0
    %240 = vmatprep.subr.mxu0 0.0
    %241 = vmatpush1.msra.mxu0 0.0
    %242 = vmatprep.subr.mxu0 0.0
    %243 = vmatpush1.msra.mxu0 0.0
    %244 = vmatprep.subr.mxu0 0.0
    %245 = vmatpush1.msra.mxu0 0.0
    %246 = vmatprep.subr.mxu0 0.0
    %247 = vmatpush1.msra.mxu0 0.0
    %248 = vmatprep.mubr.f32.mxu0 0.0
    %249 = vmatmul.mubr.f32.gmra.mrb[0].mxu0 %v182
    %v250 = vpop.f32.mrb[0].mxu0
    %v251 = vadd.f32 0.0, %v250
    %v252 = vpop.f32.mrb[0].mxu0
    %v253 = vadd.f32 0.0, %v252
    %254 = vdwg.mxu0
    %v255 = vmul.f32 %v168, %v251
    %v256 = vmul.f32 %v170, %v253
    %v257 = vsub.f32 %v255, %v256
    %v258 = vmul.f32 %v168, %v253
    %v259 = vmul.f32 %v170, %v251
    %v260 = vadd.f32 %v258, %v259
    %v261 = vld [vmem:[#allocation10] sm:$0xff]
    %v262 = vld [vmem:[#allocation10 + $0x8] sm:$0xff]
    %v263 = vld [vmem:[#allocation10 + $0x10] sm:$0xff]
    %v264 = vld [vmem:[#allocation10 + $0x18] sm:$0xff]
    %v265 = vld [vmem:[#allocation10 + $0x20] sm:$0xff]
    %v266 = vld [vmem:[#allocation10 + $0x28] sm:$0xff]
    %v267 = vld [vmem:[#allocation10 + $0x30] sm:$0xff]
    %v268 = vld [vmem:[#allocation10 + $0x38] sm:$0xff]
    %v269 = vld [vmem:[#allocation10 + $0x40] sm:$0xff]
    %v270 = vld [vmem:[#allocation10 + $0x48] sm:$0xff]
    %v271 = vld [vmem:[#allocation10 + $0x50] sm:$0xff]
    %v272 = vld [vmem:[#allocation10 + $0x58] sm:$0xff]
    %v273 = vld [vmem:[#allocation10 + $0x60] sm:$0xff]
    %v274 = vld [vmem:[#allocation10 + $0x68] sm:$0xff]
    %v275 = vld [vmem:[#allocation10 + $0x70] sm:$0xff]
    %v276 = vld [vmem:[#allocation10 + $0x78] sm:$0xff]
    %v277 = vld [vmem:[#allocation10 + $0x80] sm:$0xff]
    %v278 = vld [vmem:[#allocation10 + $0x88] sm:$0xff]
    %v279 = vld [vmem:[#allocation10 + $0x90] sm:$0xff]
    %v280 = vld [vmem:[#allocation10 + $0x98] sm:$0xff]
    %v281 = vld [vmem:[#allocation10 + $0xa0] sm:$0xff]
    %v282 = vld [vmem:[#allocation10 + $0xa8] sm:$0xff]
    %v283 = vld [vmem:[#allocation10 + $0xb0] sm:$0xff]
    %v284 = vld [vmem:[#allocation10 + $0xb8] sm:$0xff]
    %v285 = vld [vmem:[#allocation10 + $0xc0] sm:$0xff]
    %v286 = vld [vmem:[#allocation10 + $0xc8] sm:$0xff]
    %v287 = vld [vmem:[#allocation10 + $0xd0] sm:$0xff]
    %v288 = vld [vmem:[#allocation10 + $0xd8] sm:$0xff]
    %v289 = vld [vmem:[#allocation10 + $0xe0] sm:$0xff]
    %v290 = vld [vmem:[#allocation10 + $0xe8] sm:$0xff]
    %v291 = vld [vmem:[#allocation10 + $0xf0] sm:$0xff]
    %v292 = vld [vmem:[#allocation10 + $0xf8] sm:$0xff]
    %293 = vmatprep.subr.mxu0 0.0
    %294 = vmatpush1.msra.mxu0 %v261
    %295 = vmatprep.subr.mxu0 0.0
    %296 = vmatpush1.msra.mxu0 %v262
    %297 = vmatprep.subr.mxu0 0.0
    %298 = vmatpush1.msra.mxu0 %v263
    %299 = vmatprep.subr.mxu0 0.0
    %300 = vmatpush1.msra.mxu0 %v264
    %301 = vmatprep.subr.mxu0 0.0
    %302 = vmatpush1.msra.mxu0 %v265
    %303 = vmatprep.subr.mxu0 0.0
    %304 = vmatpush1.msra.mxu0 %v266
    %305 = vmatprep.subr.mxu0 0.0
    %306 = vmatpush1.msra.mxu0 %v267
    %307 = vmatprep.subr.mxu0 0.0
    %308 = vmatpush1.msra.mxu0 %v268
    %309 = vmatprep.subr.mxu0 0.0
    %310 = vmatpush1.msra.mxu0 %v269
    %311 = vmatprep.subr.mxu0 0.0
    %312 = vmatpush1.msra.mxu0 %v270
    %313 = vmatprep.subr.mxu0 0.0
    %314 = vmatpush1.msra.mxu0 %v271
    %315 = vmatprep.subr.mxu0 0.0
    %316 = vmatpush1.msra.mxu0 %v272
    %317 = vmatprep.subr.mxu0 0.0
    %318 = vmatpush1.msra.mxu0 %v273
    %319 = vmatprep.subr.mxu0 0.0
    %320 = vmatpush1.msra.mxu0 %v274
    %321 = vmatprep.subr.mxu0 0.0
    %322 = vmatpush1.msra.mxu0 %v275
    %323 = vmatprep.subr.mxu0 0.0
    %324 = vmatpush1.msra.mxu0 %v276
    %325 = vmatprep.subr.mxu0 0.0
    %326 = vmatpush1.msra.mxu0 %v277
    %327 = vmatprep.subr.mxu0 0.0
    %328 = vmatpush1.msra.mxu0 %v278
    %329 = vmatprep.subr.mxu0 0.0
    %330 = vmatpush1.msra.mxu0 %v279
    %331 = vmatprep.subr.mxu0 0.0
    %332 = vmatpush1.msra.mxu0 %v280
    %333 = vmatprep.subr.mxu0 0.0
    %334 = vmatpush1.msra.mxu0 %v281
    %335 = vmatprep.subr.mxu0 0.0
    %336 = vmatpush1.msra.mxu0 %v282
    %337 = vmatprep.subr.mxu0 0.0
    %338 = vmatpush1.msra.mxu0 %v283
    %339 = vmatprep.subr.mxu0 0.0
    %340 = vmatpush1.msra.mxu0 %v284
    %341 = vmatprep.subr.mxu0 0.0
    %342 = vmatpush1.msra.mxu0 %v285
    %343 = vmatprep.subr.mxu0 0.0
    %344 = vmatpush1.msra.mxu0 %v286
    %345 = vmatprep.subr.mxu0 0.0
    %346 = vmatpush1.msra.mxu0 %v287
    %347 = vmatprep.subr.mxu0 0.0
    %348 = vmatpush1.msra.mxu0 %v288
    %349 = vmatprep.subr.mxu0 0.0
    %350 = vmatpush1.msra.mxu0 %v289
    %351 = vmatprep.subr.mxu0 0.0
    %352 = vmatpush1.msra.mxu0 %v290
    %353 = vmatprep.subr.mxu0 0.0
    %354 = vmatpush1.msra.mxu0 %v291
    %355 = vmatprep.subr.mxu0 0.0
    %356 = vmatpush1.msra.mxu0 %v292
    %357 = vmatprep.mubr.f32.mxu0 %v260
    %358 = vmatmul.mubr.f32.gmra.mrb[0].mxu0 %v257
    %v359 = vpop.f32.mrb[0].mxu0
    %v360 = vadd.f32 0.0, %v359
    %v361 = vpop.f32.mrb[0].mxu0
    %362 = vdwg.mxu0
    %v363 = vand.u32 2147483647, %v360
    %v364 = vrsqrt.pop %v363
    %v365 = vmul.f32 %v363, %v364
    %vm366 = vcmp.eq.f32.partialorder %v363, inf
    %v367 = vsel %vm366, %v363, %v365
    %vm368 = vcmp.eq.f32.partialorder %v363, 0.0
    %v369 = vand.u32 %v363, 2147483648
    %v370 = vsel %vm368, %v369, %v367
    %vm371 = vcmp.lt.f32.partialorder %v360, 0.0
    %v372 = vsub.f32 0.0, %v370
    %v373 = vsel %vm371, %v372, %v370
    %374 = vst [vmem:[#allocation11] sm:$0xff] %v373
    %v375 = vmul.f32 %v373, %v373
    %376 = vst [vmem:[#allocation12] sm:$0xff] %v375
    // Predicated region
    $region42: #{tpu_custom_call.1} parent=1 // pred_check
      _
    $region43: #{tpu_custom_call.1} parent=1 // pred_check_branch
      %378 = sbr.rel (0) target = $region45
    $region44: #{tpu_custom_call.1} parent=1 // pred_region
      %s380 = ssub.s32 128, 128
      %381 = vsyncadd [#allocation4], %s380
      %s383 = sshll.u32 [#allocation11], 4
      %s384 = int_to_ptr.vmem [resolvable:$true] %s383
      %386 = dma.vmem_to_hbm [thread:$0]  %s384, 128, %s5, [#allocation4]
    $region45: #{tpu_custom_call.1} parent=1 // pred_fallthru
      _
    // Predicated region
    $region46: #{tpu_custom_call.1} parent=1 // pred_check
      _
    $region47: #{tpu_custom_call.1} parent=1 // pred_check_branch
      %388 = sbr.rel (0) target = $region49
    $region48: #{tpu_custom_call.1} parent=1 // pred_region
      %s390 = ssub.s32 128, 128
      %391 = vsyncadd [#allocation13], %s390
      %s393 = sshll.u32 [#allocation12], 4
      %s394 = int_to_ptr.vmem [resolvable:$true] %s393
      %396 = dma.vmem_to_hbm [thread:$0]  %s394, 128, %s6, [#allocation13]
    $region49: #{tpu_custom_call.1} parent=1 // pred_fallthru
      _
    // Predicated region
    $region50: #{tpu_custom_call.1} parent=1 // pred_check
      _
    $region51: #{tpu_custom_call.1} parent=1 // pred_check_branch
      %398 = sbr.rel (0) target = $region53
    $region52: #{tpu_custom_call.1} parent=1 // pred_region
      %399 = dma.done [#allocation4], 128
    $region53: #{tpu_custom_call.1} parent=1 // pred_fallthru
      _
    // Predicated region
    $region54: #{tpu_custom_call.1} parent=1 // pred_check
      _
    $region55: #{tpu_custom_call.1} parent=1 // pred_check_branch
      %401 = sbr.rel (0) target = $region57
    $region56: #{tpu_custom_call.1} parent=1 // pred_region
      %402 = dma.done [#allocation13], 128
    $region57: #{tpu_custom_call.1} parent=1 // pred_fallthru
      _
    %403 = vsyncpa [#allocation3], 1
    %404 = vsyncpa [#allocation6], 1
    %405 = vsyncpa [#allocation9], 1
    %406 = vsyncpa [#allocation4], 1
    %407 = vsyncpa [#allocation13], 1

</llo_original>
